<compile_context>
chip_gen: v6e
topology: v6e:2x2x1
jax: 0.10.0
libtpu: 0.0.40
codegen_flags: <defaults>
</compile_context>

<pallas_src>
import math
import functools

import jax
import jax.numpy as jnp
import numpy as np
from jax.experimental import pallas as pl
from jax.experimental.pallas import tpu as pltpu

LANE = 128           # lane width / batch-tile granularity
H_PAD = 16           # padded hidden width (sublanes), multiple of 8, holds h1=h2=10
TB_MAX = 8192        # max batch rows (lanes) per grid step
SONTAG_ALPHA = 100.0


def _round_up(n, m):
    return ((n + m - 1) // m) * m


def _sontag(x):
    # atan(x)/pi + 0.5 + cos(x) / (alpha * (1 + x^2))
    # NOTE: the dominant cost here is the atan/cos VALU polynomial chains;
    # the approx reciprocal only offloads the divide to the (otherwise idle)
    # EUP slot.  Keeping the exact atan/cos form to preserve module semantics.
    return (jnp.arctan(x) * (1.0 / math.pi) + 0.5
            + jnp.cos(x) * pl.reciprocal(SONTAG_ALPHA * (1.0 + x * x), approx=True))


def _mlp_kernel(x_ref, w1_ref, b1_ref, w2_ref, b2_ref, w3_ref, b3_ref, o_ref,
                *, sontag: bool):
    """One batch tile of the fused MLP (batch on lanes, hidden on sublanes).

    x_ref  : (2, TB)          lane-dense transposed input features
    w1_ref : (H_PAD, 2)       layer-1 weight (w1^T), zero rows >= h1
    b1_ref : (H_PAD, 1)       zero rows >= h1
    w2_ref : (H_PAD, H_PAD)   layer-2 weight (w2^T), zero cols >= h1, rows >= h2
    b2_ref : (H_PAD, 1)       zero rows >= h2
    w3_ref : (H_PAD, 1)       layer-3 weight column, zero rows >= h2
    b3_ref : (1, 1)           layer-3 bias scalar (SMEM)
    o_ref  : (1, TB)          lane-dense output row for this batch tile
    """
    act = _sontag if sontag else (lambda v: jnp.maximum(v, 0.0))

    x = x_ref[...]                                    # (2, TB)
    w1 = w1_ref[...]                                  # (H_PAD, 2)

    # Layer 1: in_features == 2 -> two outer-product broadcast FMAs (VPU).
    h = w1[:, 0:1] * x[0:1, :] + w1[:, 1:2] * x[1:2, :] + b1_ref[...]   # (H_PAD, TB)
    h = act(h)

    # Layer 2: (H_PAD, H_PAD) @ (H_PAD, TB) on the MXU.
    h = jnp.dot(w2_ref[...], h, preferred_element_type=jnp.float32) + b2_ref[...]
    h = act(h)

    # Layer 3 has a single output unit: VPU multiply + sublane (XLU) reduction
    # gives the lane-dense (1, TB) row directly, keeping the MXU free.
    y = jnp.sum(h * w3_ref[...], axis=0, keepdims=True)                 # (1, TB)
    o_ref[...] = jax.nn.sigmoid(y + b3_ref[0, 0])


def _pad2(a, rows, cols):
    a = jnp.asarray(a, jnp.float32)
    out = jnp.zeros((rows, cols), dtype=jnp.float32)
    return out.at[: a.shape[0], : a.shape[1]].set(a)


def prepare_params(params):
    """Pad / transpose parameters once (hoisted out of the per-call hot path).

    params: w1 (2,h1), b1 (h1,), w2 (h1,h2), b2 (h2,), w3 (h2,1), b3 (1,)
    All padded positions are EXACT zeros (see correctness invariant above).
    """
    w1 = jnp.asarray(params["w1"], jnp.float32)
    b1 = jnp.asarray(params["b1"], jnp.float32)
    w2 = jnp.asarray(params["w2"], jnp.float32)
    b2 = jnp.asarray(params["b2"], jnp.float32)
    w3 = jnp.asarray(params["w3"], jnp.float32)
    b3 = jnp.asarray(params["b3"], jnp.float32)
    return {
        "w1": _pad2(w1.T, H_PAD, 2),            # (H_PAD, 2)
        "b1": _pad2(b1[:, None], H_PAD, 1),     # (H_PAD, 1)
        "w2": _pad2(w2.T, H_PAD, H_PAD),        # (H_PAD, H_PAD)
        "b2": _pad2(b2[:, None], H_PAD, 1),     # (H_PAD, 1)
        "w3": _pad2(w3, H_PAD, 1),              # (H_PAD, 1)
        "b3": b3.reshape(1, 1),                 # (1, 1) SMEM scalar
    }


def _choose_tb(batch):
    bp = _round_up(batch, LANE)
    if bp < 512:
        # Too small to be worth splitting: one tile.
        return bp
    # Guarantee >= 2 grid steps (so the "parallel" batch axis can shard across
    # both v7x TensorCores), while using big tiles to amortize per-step cost.
    return min(TB_MAX, _round_up((bp + 1) // 2, LANE))


@functools.partial(jax.jit, static_argnames=("sontag", "tb"))
def rede_neural2_forward(x, padded_params, *, sontag=False, tb=None):
    """x: (B, 2) float32. padded_params: output of prepare_params().
    Returns (B, 1) float32."""
    B = x.shape[0]
    if tb is None:
        tb = _choose_tb(B)
    Bp = _round_up(B, tb)
    num_tiles = Bp // tb

    # One transpose to the lane-dense (2, B) layout; the tail pad (only when
    # B % tb != 0) fuses with it in XLA.
    xt = jnp.asarray(x, jnp.float32).T                     # (2, B)
    if Bp != B:
        xt = jnp.pad(xt, ((0, 0), (0, Bp - B)))            # (2, Bp)

    p = padded_params
    out = pl.pallas_call(
        functools.partial(_mlp_kernel, sontag=sontag),
        out_shape=jax.ShapeDtypeStruct((1, Bp), jnp.float32),
        grid_spec=pltpu.PrefetchScalarGridSpec(
            num_scalar_prefetch=0,
            grid=(num_tiles,),
            in_specs=[
                pl.BlockSpec((2, tb), lambda i: (0, i)),            # x tile (lane-dense)
                pl.BlockSpec((H_PAD, 2), lambda i: (0, 0)),         # w1^T
                pl.BlockSpec((H_PAD, 1), lambda i: (0, 0)),         # b1
                pl.BlockSpec((H_PAD, H_PAD), lambda i: (0, 0)),     # w2^T
                pl.BlockSpec((H_PAD, 1), lambda i: (0, 0)),         # b2
                pl.BlockSpec((H_PAD, 1), lambda i: (0, 0)),         # w3 column
                pl.BlockSpec(memory_space=pltpu.MemorySpace.SMEM),  # b3 scalar
            ],
            out_specs=pl.BlockSpec((1, tb), lambda i: (0, i)),
        ),
        compiler_params=pltpu.CompilerParams(
            dimension_semantics=("parallel",)),
    )(xt, p["w1"], p["b1"], p["w2"], p["b2"], p["w3"], p["b3"])

    return out[0, :B].reshape(B, 1)


def _init_params(key, h1=10, h2=10):
    ks = jax.random.split(key, 6)

    def lin(kw, kb, fan_in, fan_out):
        # PyTorch nn.Linear default init: U(-1/sqrt(fan_in), 1/sqrt(fan_in))
        bound = 1.0 / math.sqrt(fan_in)
        w = jax.random.uniform(kw, (fan_in, fan_out), jnp.float32, -bound, bound)
        b = jax.random.uniform(kb, (fan_out,), jnp.float32, -bound, bound)
        return w, b

    w1, b1 = lin(ks[0], ks[1], 2, h1)
    w2, b2 = lin(ks[2], ks[3], h1, h2)
    w3, b3 = lin(ks[4], ks[5], h2, 1)
    return {"w1": w1, "b1": b1, "w2": w2, "b2": b2, "w3": w3, "b3": b3}


def _sontag_ref(x):
    return jnp.arctan(x) / math.pi + 0.5 + jnp.cos(x) / (SONTAG_ALPHA * (1.0 + x * x))


def _reference(x, p, sontag=False):
    act = _sontag_ref if sontag else (lambda v: jnp.maximum(v, 0.0))
    h = act(x @ p["w1"] + p["b1"])
    h = act(h @ p["w2"] + p["b2"])
    return jax.nn.sigmoid(h @ p["w3"] + p["b3"])


if __name__ == "__main__":
    key = jax.random.PRNGKey(0)
    kx1, kx2, kp = jax.random.split(key, 3)

    h1, h2 = 10, 10
    params = _init_params(kp, h1=h1, h2=h2)
    padded = prepare_params(params)

    # Small single-tile case, plus a forced-small-tile case that exercises the
    # multi-step grid / ragged-batch padding path.
    cases = [
        (jax.random.normal(kx1, (8, 2), jnp.float32), None),
        (jax.random.normal(kx2, (300, 2), jnp.float32), 128),
    ]
    for x, tb in cases:
        for sontag in (False, True):
            out = rede_neural2_forward(x, padded, sontag=sontag, tb=tb)
            out = jax.block_until_ready(out)
            ref = _reference(x, params, sontag=sontag)
            # slightly looser tol: Sontag term uses the approx EUP reciprocal
            np.testing.assert_allclose(np.asarray(out), np.asarray(ref),
                                       rtol=1e-4, atol=1e-4)

    print("KERNEL_OK")
</pallas_src>

<mosaic_0001>
module attributes {stable_mosaic.version = 11 : i64} {
  func.func @_mlp_kernel(%arg0: i32, %arg1: memref<2x128xf32, #tpu.memory_space<vmem>>, %arg2: memref<16x2xf32, #tpu.memory_space<vmem>>, %arg3: memref<16x1xf32, #tpu.memory_space<vmem>>, %arg4: memref<16x16xf32, #tpu.memory_space<vmem>>, %arg5: memref<16x1xf32, #tpu.memory_space<vmem>>, %arg6: memref<16x1xf32, #tpu.memory_space<vmem>>, %arg7: memref<1x1xf32, #tpu.memory_space<smem>>, %arg8: memref<1x128xf32, #tpu.memory_space<vmem>>) attributes {dimension_semantics = [#tpu.dimension_semantics<parallel>], iteration_bounds = array<i64: 1>, scalar_prefetch = 0 : i64, scratch_operands = 0 : i64, tpu.core_type = #tpu.core_type<tc>, window_params = [{transform_indices = @transform_0, window_bounds = array<i64: 2, 128>}, {pipeline_mode = #tpu.pipeline_mode<synchronous>, transform_indices = @transform_1, window_bounds = array<i64: 16, 2>}, {pipeline_mode = #tpu.pipeline_mode<synchronous>, transform_indices = @transform_2, window_bounds = array<i64: 16, 1>}, {pipeline_mode = #tpu.pipeline_mode<synchronous>, transform_indices = @transform_3, window_bounds = array<i64: 16, 16>}, {pipeline_mode = #tpu.pipeline_mode<synchronous>, transform_indices = @transform_4, window_bounds = array<i64: 16, 1>}, {pipeline_mode = #tpu.pipeline_mode<synchronous>, transform_indices = @transform_5, window_bounds = array<i64: 16, 1>}, {transform_indices = @transform_6, window_bounds = array<i64: 1, 1>}, {transform_indices = @transform_7, window_bounds = array<i64: 1, 128>}]} {
    %c0 = arith.constant 0 : index
    %c0_0 = arith.constant 0 : index
    %0 = vector.load %arg1[%c0, %c0_0] : memref<2x128xf32, #tpu.memory_space<vmem>>, vector<2x128xf32>
    %c0_1 = arith.constant 0 : index
    %c0_2 = arith.constant 0 : index
    %1 = vector.load %arg2[%c0_1, %c0_2] : memref<16x2xf32, #tpu.memory_space<vmem>>, vector<16x2xf32>
    %2 = vector.extract_strided_slice %1 {offsets = [0, 0], sizes = [16, 1], strides = [1, 1]} : vector<16x2xf32> to vector<16x1xf32>
    %3 = vector.extract_strided_slice %0 {offsets = [0, 0], sizes = [1, 128], strides = [1, 1]} : vector<2x128xf32> to vector<1x128xf32>
    %4 = vector.broadcast %2 : vector<16x1xf32> to vector<16x128xf32>
    %5 = vector.broadcast %3 : vector<1x128xf32> to vector<16x128xf32>
    %6 = arith.mulf %4, %5 : vector<16x128xf32>
    %7 = vector.extract_strided_slice %1 {offsets = [0, 1], sizes = [16, 1], strides = [1, 1]} : vector<16x2xf32> to vector<16x1xf32>
    %8 = vector.extract_strided_slice %0 {offsets = [1, 0], sizes = [1, 128], strides = [1, 1]} : vector<2x128xf32> to vector<1x128xf32>
    %9 = vector.broadcast %7 : vector<16x1xf32> to vector<16x128xf32>
    %10 = vector.broadcast %8 : vector<1x128xf32> to vector<16x128xf32>
    %11 = arith.mulf %9, %10 : vector<16x128xf32>
    %12 = arith.addf %6, %11 : vector<16x128xf32>
    %c0_3 = arith.constant 0 : index
    %c0_4 = arith.constant 0 : index
    %13 = vector.load %arg3[%c0_3, %c0_4] : memref<16x1xf32, #tpu.memory_space<vmem>>, vector<16x1xf32>
    %14 = vector.broadcast %13 : vector<16x1xf32> to vector<16x128xf32>
    %15 = arith.addf %12, %14 : vector<16x128xf32>
    %cst = arith.constant 0.000000e+00 : f32
    %16 = vector.broadcast %cst : f32 to vector<16x128xf32>
    %17 = arith.maximumf %15, %16 : vector<16x128xf32>
    %c0_5 = arith.constant 0 : index
    %c0_6 = arith.constant 0 : index
    %18 = vector.load %arg4[%c0_5, %c0_6] : memref<16x16xf32, #tpu.memory_space<vmem>>, vector<16x16xf32>
    %cst_7 = arith.constant dense<0.000000e+00> : vector<16x128xf32>
    %19 = tpu.matmul %18, %17, %cst_7 {dimension_numbers = #tpu.dot_dimension_numbers<[1], [0], [0], [1], [0, 0, 1, 1], [], []>} : vector<16x16xf32>, vector<16x128xf32>, vector<16x128xf32> -> vector<16x128xf32>
    %c0_8 = arith.constant 0 : index
    %c0_9 = arith.constant 0 : index
    %20 = vector.load %arg5[%c0_8, %c0_9] : memref<16x1xf32, #tpu.memory_space<vmem>>, vector<16x1xf32>
    %21 = vector.broadcast %20 : vector<16x1xf32> to vector<16x128xf32>
    %22 = arith.addf %19, %21 : vector<16x128xf32>
    %cst_10 = arith.constant 0.000000e+00 : f32
    %23 = vector.broadcast %cst_10 : f32 to vector<16x128xf32>
    %24 = arith.maximumf %22, %23 : vector<16x128xf32>
    %c0_11 = arith.constant 0 : index
    %c0_12 = arith.constant 0 : index
    %25 = vector.load %arg6[%c0_11, %c0_12] : memref<16x1xf32, #tpu.memory_space<vmem>>, vector<16x1xf32>
    %26 = vector.broadcast %25 : vector<16x1xf32> to vector<16x128xf32>
    %27 = arith.mulf %24, %26 : vector<16x128xf32>
    %cst_13 = arith.constant dense<0.000000e+00> : vector<128xf32>
    %28 = vector.multi_reduction <add>, %27, %cst_13 [0] : vector<16x128xf32> to vector<128xf32>
    %29 = vector.shape_cast %28 : vector<128xf32> to vector<1x128xf32>
    %c0_14 = arith.constant 0 : index
    %c0_15 = arith.constant 0 : index
    %30 = memref.load %arg7[%c0_14, %c0_15] : memref<1x1xf32, #tpu.memory_space<smem>>
    %31 = vector.broadcast %30 : f32 to vector<1x128xf32>
    %32 = arith.addf %29, %31 : vector<1x128xf32>
    %33 = arith.negf %32 : vector<1x128xf32>
    %34 = math.exp %33 : vector<1x128xf32>
    %cst_16 = arith.constant 1.000000e+00 : f32
    %35 = vector.broadcast %cst_16 : f32 to vector<1x128xf32>
    %36 = arith.addf %35, %34 : vector<1x128xf32>
    %37 = arith.divf %35, %36 : vector<1x128xf32>
    %c0_17 = arith.constant 0 : index
    %c0_18 = arith.constant 0 : index
    %38 = vector.load %arg8[%c0_17, %c0_18] : memref<1x128xf32, #tpu.memory_space<vmem>>, vector<1x128xf32>
    tpu.vector_store %arg8[%c0_17, %c0_18], %37 {strides = array<i32>} : memref<1x128xf32, #tpu.memory_space<vmem>>, vector<1x128xf32>,
    return
  }
  func.func @transform_0(%arg0: i32) -> (i32, i32) {
    %c0_i32 = arith.constant 0 : i32
    %c0_i32_0 = arith.constant 0 : i32
    return %c0_i32, %arg0 : i32, i32
  }
  func.func @transform_1(%arg0: i32) -> (i32, i32) {
    %c0_i32 = arith.constant 0 : i32
    %c0_i32_0 = arith.constant 0 : i32
    %c0_i32_1 = arith.constant 0 : i32
    return %c0_i32, %c0_i32_0 : i32, i32
  }
  func.func @transform_2(%arg0: i32) -> (i32, i32) {
    %c0_i32 = arith.constant 0 : i32
    %c0_i32_0 = arith.constant 0 : i32
    %c0_i32_1 = arith.constant 0 : i32
    return %c0_i32, %c0_i32_0 : i32, i32
  }
  func.func @transform_3(%arg0: i32) -> (i32, i32) {
    %c0_i32 = arith.constant 0 : i32
    %c0_i32_0 = arith.constant 0 : i32
    %c0_i32_1 = arith.constant 0 : i32
    return %c0_i32, %c0_i32_0 : i32, i32
  }
  func.func @transform_4(%arg0: i32) -> (i32, i32) {
    %c0_i32 = arith.constant 0 : i32
    %c0_i32_0 = arith.constant 0 : i32
    %c0_i32_1 = arith.constant 0 : i32
    return %c0_i32, %c0_i32_0 : i32, i32
  }
  func.func @transform_5(%arg0: i32) -> (i32, i32) {
    %c0_i32 = arith.constant 0 : i32
    %c0_i32_0 = arith.constant 0 : i32
    %c0_i32_1 = arith.constant 0 : i32
    return %c0_i32, %c0_i32_0 : i32, i32
  }
  func.func @transform_6(%arg0: i32) -> (i32, i32) {
    %c0_i32 = arith.constant 0 : i32
    %c0_i32_0 = arith.constant 0 : i32
    %c0_i32_1 = arith.constant 0 : i32
    return %c0_i32, %c0_i32_0 : i32, i32
  }
  func.func @transform_7(%arg0: i32) -> (i32, i32) {
    %c0_i32 = arith.constant 0 : i32
    %c0_i32_0 = arith.constant 0 : i32
    return %c0_i32, %arg0 : i32, i32
  }
}

</mosaic_0001>

<llo_original>
// kernel: rede_neural2_forward.1
$region0: #{rede_neural2_forward.1}
  #allocation0 [shape = 'u32[]', space=smem, size = 0x4, offset = 0x4, fixed_abs, tag = 'smem constant byte address 0x4 - core index']
  #allocation1 [shape = 'u32[144,128]{1,0:T(1,128)}', space=vmem, size = 0x12000, scoped, tag = 'internal scratch']
  #allocation2 [shape = 'f32[1,1]{1,0:T(1,128)S(6)}', space=smem, size = 0x200, scoped, tag = 'scoped memory for rede_neural2_forward.1']
  %s0 = inlined_call_operand.vmem [shape: f32[2,128], index: 0, kind: input, shape index: {}]
  %s1 = inlined_call_operand.vmem [shape: f32[16,2], index: 1, kind: input, shape index: {}]
  %s2 = inlined_call_operand.vmem [shape: f32[16,1], index: 2, kind: input, shape index: {}]
  %s3 = inlined_call_operand.vmem [shape: f32[16,16], index: 3, kind: input, shape index: {}]
  %s4 = inlined_call_operand.vmem [shape: f32[16,1], index: 4, kind: input, shape index: {}]
  %s5 = inlined_call_operand.vmem [shape: f32[16,1], index: 5, kind: input, shape index: {}]
  %s6 = inlined_call_operand.<no memory space> [shape: f32[1,1], index: 6, kind: input, shape index: {}]
  %s7 = inlined_call_operand.vmem [shape: f32[1,128], index: 7, kind: output, shape index: {}]
  %s8 = sld [smem:[#allocation0]]
  $region38: #{rede_neural2_forward.1} parent=0
    _
  %s10 = ssub.s32 1, %s8
  %s11 = scalar_select 0, %s10, %s8
  %12 = sst [smem:[#allocation2]] %s6
  // Predicated region
  $region2: #{rede_neural2_forward.1} parent=0 // pred_check
    _
  $region3: #{rede_neural2_forward.1} parent=0 // pred_check_branch
    %14 = sbr.rel (0) target = $region5
  $region4: #{rede_neural2_forward.1} parent=0 // pred_region
    _
  $region5: #{rede_neural2_forward.1} parent=0 // pred_fallthru
    _
  // Predicated region
  $region6: #{rede_neural2_forward.1} parent=0 // pred_check
    _
  $region7: #{rede_neural2_forward.1} parent=0 // pred_check_branch
    %16 = sbr.rel (0) target = $region9
  $region8: #{rede_neural2_forward.1} parent=0 // pred_region
    _
  $region9: #{rede_neural2_forward.1} parent=0 // pred_fallthru
    _
  // Predicated region
  $region10: #{rede_neural2_forward.1} parent=0 // pred_check
    _
  $region11: #{rede_neural2_forward.1} parent=0 // pred_check_branch
    %18 = sbr.rel (0) target = $region13
  $region12: #{rede_neural2_forward.1} parent=0 // pred_region
    _
  $region13: #{rede_neural2_forward.1} parent=0 // pred_fallthru
    _
  // Predicated region
  $region14: #{rede_neural2_forward.1} parent=0 // pred_check
    _
  $region15: #{rede_neural2_forward.1} parent=0 // pred_check_branch
    %20 = sbr.rel (0) target = $region17
  $region16: #{rede_neural2_forward.1} parent=0 // pred_region
    _
  $region17: #{rede_neural2_forward.1} parent=0 // pred_fallthru
    _
  // Predicated region
  $region18: #{rede_neural2_forward.1} parent=0 // pred_check
    _
  $region19: #{rede_neural2_forward.1} parent=0 // pred_check_branch
    %22 = sbr.rel (0) target = $region21
  $region20: #{rede_neural2_forward.1} parent=0 // pred_region
    _
  $region21: #{rede_neural2_forward.1} parent=0 // pred_fallthru
    _
  // Predicated region
  $region22: #{rede_neural2_forward.1} parent=0 // pred_check
    _
  $region23: #{rede_neural2_forward.1} parent=0 // pred_check_branch
    %24 = sbr.rel (0) target = $region25
  $region24: #{rede_neural2_forward.1} parent=0 // pred_region
    _
  $region25: #{rede_neural2_forward.1} parent=0 // pred_fallthru
    _
  // Predicated region
  $region26: #{rede_neural2_forward.1} parent=0 // pred_check
    _
  $region27: #{rede_neural2_forward.1} parent=0 // pred_check_branch
    %26 = sbr.rel (0) target = $region29
  $region28: #{rede_neural2_forward.1} parent=0 // pred_region
    _
  $region29: #{rede_neural2_forward.1} parent=0 // pred_fallthru
    _
  %v27 = vld [vmem:[%s0] sm:$0x3]
  %v28 = vld [vmem:[%s1] sm:$0xff]
  %v29 = vld [vmem:[%s1 + $0x8] sm:$0xff]
  %31 = vset.pattern.permute.xlu0 0
  %32 = vperm.xlu0 %31, %v28
  %v33 = vpop.permute.xlu0 %32
  %36 = vset.pattern.permute.xlu0 0
  %37 = vperm.xlu0 %36, %v29
  %v38 = vpop.permute.xlu0 %37
  %v40 = vlaneseq
  %v41 = vshrl.u32 %v40, 7
  %v42 = vsub.s32 0, %v41
  %v43 = vrot.slane %v27, %v42
  %v44 = vmul.f32 %v33, %v43
  %v45 = vmul.f32 %v38, %v43
  %46 = vset.pattern.permute.xlu0 1
  %47 = vperm.xlu0 %46, %v28
  %v48 = vpop.permute.xlu0 %47
  %50 = vset.pattern.permute.xlu0 1
  %51 = vperm.xlu0 %50, %v29
  %v52 = vpop.permute.xlu0 %51
  %v54 = vlaneseq
  %v55 = vshrl.u32 %v54, 7
  %v56 = vsub.s32 1, %v55
  %v57 = vrot.slane %v27, %v56
  %v58 = vmul.f32 %v48, %v57
  %v59 = vmul.f32 %v52, %v57
  %v60 = vadd.f32 %v44, %v58
  %v61 = vadd.f32 %v45, %v59
  %v62 = vld [vmem:[%s2] sm:$0xff]
  %v63 = vld [vmem:[%s2 + $0x8] sm:$0xff]
  %65 = vset.pattern.permute.xlu0 0
  %66 = vperm.xlu0 %65, %v62
  %v67 = vpop.permute.xlu0 %66
  %70 = vset.pattern.permute.xlu0 0
  %71 = vperm.xlu0 %70, %v63
  %v72 = vpop.permute.xlu0 %71
  %v74 = vadd.f32 %v60, %v67
  %v75 = vadd.f32 %v61, %v72
  %v76 = vmax.f32 %v74, 0.0
  %v77 = vmax.f32 %v75, 0.0
  %v78 = vld [vmem:[%s3] sm:$0xff]
  %v79 = vld [vmem:[%s3 + $0x8] sm:$0xff]
  %v80 = vld [vmem:[%s4] sm:$0xff]
  %v81 = vld [vmem:[%s4 + $0x8] sm:$0xff]
  %83 = vset.pattern.permute.xlu0 0
  %84 = vperm.xlu0 %83, %v80
  %v85 = vpop.permute.xlu0 %84
  %88 = vset.pattern.permute.xlu0 0
  %89 = vperm.xlu0 %88, %v81
  %v90 = vpop.permute.xlu0 %89
  %vm92 = vcmask 130048
  %v94 = vsel %vm92, %v78, 0
  %v97 = vsel %vm92, %v79, 0
  %99 = vmatprep.subr.mxu0 0.0
  %100 = vmatpush1.msra.mxu0 0.0
  %101 = vmatprep.subr.mxu0 0.0
  %102 = vmatpush1.msra.mxu0 0.0
  %103 = vmatprep.subr.mxu0 0.0
  %104 = vmatpush1.msra.mxu0 0.0
  %105 = vmatprep.subr.mxu0 0.0
  %106 = vmatpush1.msra.mxu0 0.0
  %107 = vmatprep.subr.mxu0 0.0
  %108 = vmatpush1.msra.mxu0 0.0
  %109 = vmatprep.subr.mxu0 0.0
  %110 = vmatpush1.msra.mxu0 0.0
  %111 = vmatprep.subr.mxu0 0.0
  %112 = vmatpush1.msra.mxu0 0.0
  %113 = vmatprep.subr.mxu0 0.0
  %114 = vmatpush1.msra.mxu0 0.0
  %115 = vmatprep.subr.mxu0 0.0
  %116 = vmatpush1.msra.mxu0 0.0
  %117 = vmatprep.subr.mxu0 0.0
  %118 = vmatpush1.msra.mxu0 0.0
  %119 = vmatprep.subr.mxu0 0.0
  %120 = vmatpush1.msra.mxu0 0.0
  %121 = vmatprep.subr.mxu0 0.0
  %122 = vmatpush1.msra.mxu0 0.0
  %123 = vmatprep.subr.mxu0 0.0
  %124 = vmatpush1.msra.mxu0 0.0
  %125 = vmatprep.subr.mxu0 0.0
  %126 = vmatpush1.msra.mxu0 0.0
  %127 = vmatprep.subr.mxu0 0.0
  %128 = vmatpush1.msra.mxu0 %v77
  %129 = vmatprep.subr.mxu0 0.0
  %130 = vmatpush1.msra.mxu0 %v76
  %131 = vmatprep.subr.mxu0 0.0
  %132 = vmatpush2.msra.mxu0 0.0
  %133 = vmatprep.subr.mxu0 0.0
  %134 = vmatpush2.msra.mxu0 0.0
  %135 = vmatprep.subr.mxu0 0.0
  %136 = vmatpush2.msra.mxu0 0.0
  %137 = vmatprep.subr.mxu0 0.0
  %138 = vmatpush2.msra.mxu0 0.0
  %139 = vmatprep.subr.mxu0 0.0
  %140 = vmatpush2.msra.mxu0 0.0
  %141 = vmatprep.subr.mxu0 0.0
  %142 = vmatpush2.msra.mxu0 0.0
  %143 = vmatprep.subr.mxu0 0.0
  %144 = vmatpush2.msra.mxu0 0.0
  %145 = vmatprep.subr.mxu0 0.0
  %146 = vmatpush2.msra.mxu0 0.0
  %147 = vmatprep.subr.mxu0 0.0
  %148 = vmatpush2.msra.mxu0 0.0
  %149 = vmatprep.subr.mxu0 0.0
  %150 = vmatpush2.msra.mxu0 0.0
  %151 = vmatprep.subr.mxu0 0.0
  %152 = vmatpush2.msra.mxu0 0.0
  %153 = vmatprep.subr.mxu0 0.0
  %154 = vmatpush2.msra.mxu0 0.0
  %155 = vmatprep.subr.mxu0 0.0
  %156 = vmatpush2.msra.mxu0 0.0
  %157 = vmatprep.subr.mxu0 0.0
  %158 = vmatpush2.msra.mxu0 0.0
  %159 = vmatprep.subr.mxu0 0.0
  %160 = vmatpush2.msra.mxu0 0.0
  %161 = vmatprep.subr.mxu0 0.0
  %162 = vmatpush2.msra.mxu0 0.0
  %163 = vmatprep.mubr.f32.mxu0 0.0
  %164 = vmatmul.mubr.f32.gmra.mxu0 %v94
  %v165 = vpop.f32.mrf.mxu0
  %v166 = vadd.f32 %v85, %v165
  %v167 = vpop.f32.mrf.mxu0
  %168 = vmatprep.mubr.f32.mxu0 0.0
  %169 = vmatmul.mubr.f32.gmra.mxu0 %v97
  %v170 = vpop.f32.mrf.mxu0
  %v171 = vadd.f32 %v90, %v170
  %v172 = vpop.f32.mrf.mxu0
  %173 = vdwg.mxu0
  %v174 = vmax.f32 %v166, 0.0
  %v175 = vmax.f32 %v171, 0.0
  %v176 = vld [vmem:[%s5] sm:$0xff]
  %v177 = vld [vmem:[%s5 + $0x8] sm:$0xff]
  %179 = vset.pattern.permute.xlu0 0
  %180 = vperm.xlu0 %179, %v176
  %v181 = vpop.permute.xlu0 %180
  %184 = vset.pattern.permute.xlu0 0
  %185 = vperm.xlu0 %184, %v177
  %v186 = vpop.permute.xlu0 %185
  %v188 = vmul.f32 %v174, %v181
  %v189 = vmul.f32 %v175, %v186
  %v190 = vadd.f32 %v188, %v189
  %v191 = vrot.slane %v190, 4
  %v192 = vadd.f32 %v190, %v191
  %v193 = vrot.slane %v192, 2
  %v194 = vadd.f32 %v192, %v193
  %v195 = vrot.slane %v194, 1
  %v196 = vadd.f32 %v194, %v195
  %s197 = sld [smem:[#allocation2]]
  %v198 = vstv %s197
  %v199 = vadd.f32 %v196, %v198
  %v200 = vxor.u32 %v199, 2147483648
  %v201 = vmul.f32 %v200, 1.442695
  %v202 = vpow.pop %v201
  %v203 = vadd.f32 %v202, 1.0
  %v204 = vrcp.pop %v203
  %v205 = vmul.f32 1.0, %v204
  %206 = vst [vmem:[%s7] sm:$0x1] %v205
  // Predicated region
  $region30: #{rede_neural2_forward.1} parent=0 // pred_check
    _
  $region31: #{rede_neural2_forward.1} parent=0 // pred_check_branch
    %208 = sbr.rel (0) target = $region33
  $region32: #{rede_neural2_forward.1} parent=0 // pred_region
    _
  $region33: #{rede_neural2_forward.1} parent=0 // pred_fallthru
    _
  // Predicated region
  $region34: #{rede_neural2_forward.1} parent=0 // pred_check
    _
  $region35: #{rede_neural2_forward.1} parent=0 // pred_check_branch
    %210 = sbr.rel (0) target = $region37
  $region36: #{rede_neural2_forward.1} parent=0 // pred_region
    _
  $region37: #{rede_neural2_forward.1} parent=0 // pred_fallthru
    _

</llo_original>
